<compile_context>
chip_gen: v6e
topology: v6e:2x2x1
jax: 0.10.0
libtpu: 0.0.40
codegen_flags: <defaults>
</compile_context>

<pallas_src>
import functools

import jax
import jax.numpy as jnp
from jax.experimental import pallas as pl
from jax.experimental.pallas import tpu as pltpu


def _pick_tile(n, candidates):
    for t in candidates:
        if t <= n and n % t == 0:
            return t
    return n


# ----------------------------------------------------------------------------
# Kernel 1: fused 1x1 conv == matmul + per-channel affine (folded BN / bias,
#           ImplicitA folded into shift) + optional SiLU + post-mul (ImplicitM).
#           M-tiled (parallel) x K-tiled (arbitrary); bf16 MXU, f32 accumulate
#           directly into the resident f32 output block.
# ----------------------------------------------------------------------------
def _mm_affine_act_kernel(x_ref, w_ref, scale_ref, shift_ref, post_ref,
                          o_ref, *, act):
    k = pl.program_id(1)

    @pl.when(k == 0)
    def _():
        o_ref[...] = jnp.zeros_like(o_ref)

    o_ref[...] += jnp.dot(x_ref[...].astype(jnp.bfloat16), w_ref[...],
                          preferred_element_type=jnp.float32)

    @pl.when(k == pl.num_programs(1) - 1)
    def _():
        y = o_ref[...] * scale_ref[...] + shift_ref[...]
        if act == "silu":
            y = y * jax.nn.sigmoid(y)
        o_ref[...] = (y * post_ref[...]).astype(o_ref.dtype)


def matmul_affine_act(x, w_bf16, scale, shift, post, act="none"):
    """y = act((x @ w) * scale + shift) * post ; x:(M,K) f32, w:(K,N) bf16."""
    M, K = x.shape
    K2, N = w_bf16.shape
    assert K == K2
    tm = _pick_tile(M, (512, 256, 128))
    tk = _pick_tile(K, (256, 128))
    kernel = functools.partial(_mm_affine_act_kernel, act=act)
    return pl.pallas_call(
        kernel,
        out_shape=jax.ShapeDtypeStruct((M, N), jnp.float32),
        grid_spec=pltpu.PrefetchScalarGridSpec(
            num_scalar_prefetch=0,
            grid=(M // tm, K // tk),
            in_specs=[
                pl.BlockSpec((tm, tk), lambda i, k: (i, k)),
                pl.BlockSpec((tk, N), lambda i, k: (k, 0)),
                pl.BlockSpec((1, N), lambda i, k: (0, 0)),
                pl.BlockSpec((1, N), lambda i, k: (0, 0)),
                pl.BlockSpec((1, N), lambda i, k: (0, 0)),
            ],
            out_specs=pl.BlockSpec((tm, N), lambda i, k: (i, 0)),
        ),
        compiler_params=pltpu.CompilerParams(
            dimension_semantics=("parallel", "arbitrary")),
    )(x, w_bf16,
      scale.reshape(1, N).astype(jnp.float32),
      shift.reshape(1, N).astype(jnp.float32),
      post.reshape(1, N).astype(jnp.float32))


# ----------------------------------------------------------------------------
# Kernel 2: fused 3x3 conv (stride 1, pad 1) + affine + optional SiLU.
#           No im2col in HBM: the input is padded once, and the 9 taps are
#           accumulated in-kernel with shifted slices (bf16 MXU, f32 acc in o_ref).
# ----------------------------------------------------------------------------
def _conv3x3_kernel(xp_ref, w_ref, scale_ref, shift_ref, o_ref, *, H, W, act):
    HW = H * W
    C = w_ref.shape[1]
    N = w_ref.shape[2]
    o_ref[0] = jnp.zeros((HW, N), jnp.float32)
    for dy in range(3):
        for dx in range(3):
            xt = xp_ref[0, dy:dy + H, dx:dx + W, :]
            xt = xt.reshape(HW, C).astype(jnp.bfloat16)
            o_ref[0] += jnp.dot(xt, w_ref[dy * 3 + dx],
                                preferred_element_type=jnp.float32)
    y = o_ref[0] * scale_ref[...] + shift_ref[...]
    if act == "silu":
        y = y * jax.nn.sigmoid(y)
    o_ref[0] = y.astype(o_ref.dtype)


def conv3x3_affine_act(x_nhwc, w9_bf16, scale, shift, act="silu"):
    """x:(B,H,W,C) f32, w9:(9,C,N) bf16 -> (B, H*W, N) f32."""
    B, H, W, C = x_nhwc.shape
    N = w9_bf16.shape[2]
    xp = jnp.pad(x_nhwc, ((0, 0), (1, 1), (1, 1), (0, 0)))
    # TODO(synk): for very large H*W add an output-row tile axis to the grid.
    kernel = functools.partial(_conv3x3_kernel, H=H, W=W, act=act)
    return pl.pallas_call(
        kernel,
        out_shape=jax.ShapeDtypeStruct((B, H * W, N), jnp.float32),
        grid_spec=pltpu.PrefetchScalarGridSpec(
            num_scalar_prefetch=0,
            grid=(B,),
            in_specs=[
                pl.BlockSpec((1, H + 2, W + 2, C), lambda b: (b, 0, 0, 0)),
                pl.BlockSpec((9, C, N), lambda b: (0, 0, 0)),
                pl.BlockSpec((1, N), lambda b: (0, 0)),
                pl.BlockSpec((1, N), lambda b: (0, 0)),
            ],
            out_specs=pl.BlockSpec((1, H * W, N), lambda b: (b, 0, 0)),
        ),
        compiler_params=pltpu.CompilerParams(
            dimension_semantics=("parallel",)),
    )(xp, w9_bf16,
      scale.reshape(1, N).astype(jnp.float32),
      shift.reshape(1, N).astype(jnp.float32))


# ----------------------------------------------------------------------------
# Kernel 3: fused SALayer pair (cls + reg gates).  groups=64 and C>=128 mean
#           channel//(2*groups)==1, so all SA parameters are scalars.
#           Outputs are PRE-channel_shuffle; the shuffle is folded into the
#           first 3x3 conv weights of each branch.
# ----------------------------------------------------------------------------
def _sa_pair_kernel(x_ref, ocls_ref, oreg_ref, *, pc, pr, eps):
    x = x_ref[0]                                       # (HW, C)
    HW, C = x.shape
    mean = jnp.mean(x, axis=0, keepdims=True)          # per-channel spatial mean
    var = jnp.mean((x - mean) ** 2, axis=0, keepdims=True)
    xhat = (x - mean) * jax.lax.rsqrt(var + eps)       # GroupNorm(1,1) normalization
    cidx = jax.lax.broadcasted_iota(jnp.int32, (HW, C), 1)
    is_even = (cidx % 2) == 0

    def gated(p):
        t_even = jax.nn.sigmoid(p["cw"] * mean + p["cb"])      # avg-pool branch gate
        xs = p["gnw"] * xhat + p["gnb"]
        t_odd = jax.nn.sigmoid(p["sw"] * xs + p["sb"])         # GN branch gate
        return x * jnp.where(is_even, t_even, t_odd)

    ocls_ref[0] = gated(pc).astype(ocls_ref.dtype)
    oreg_ref[0] = gated(pr).astype(oreg_ref.dtype)


def sa_layer_pair(x3, p_cls, p_reg):
    """x3: (B, HW, C) -> (cls_gated, reg_gated), both pre-shuffle."""
    B, HW, C = x3.shape
    kernel = functools.partial(_sa_pair_kernel, pc=p_cls, pr=p_reg, eps=1e-5)
    return pl.pallas_call(
        kernel,
        out_shape=(jax.ShapeDtypeStruct((B, HW, C), jnp.float32),
                   jax.ShapeDtypeStruct((B, HW, C), jnp.float32)),
        grid_spec=pltpu.PrefetchScalarGridSpec(
            num_scalar_prefetch=0,
            grid=(B,),
            in_specs=[pl.BlockSpec((1, HW, C), lambda b: (b, 0, 0))],
            out_specs=[pl.BlockSpec((1, HW, C), lambda b: (b, 0, 0)),
                       pl.BlockSpec((1, HW, C), lambda b: (b, 0, 0))],
        ),
        compiler_params=pltpu.CompilerParams(dimension_semantics=("parallel",)),
    )(x3)


# ----------------------------------------------------------------------------
# Kernel 4: deform_conv2d with 1x1 all-ones depthwise weight, 4 offset groups
#           == per-channel bilinear resampling with zero padding.
#           Separable formulation: (HW,W)x(W,H) matmul + row-reduce per channel
#           (exactly equals torchvision's bilinear incl. boundary handling).
# ----------------------------------------------------------------------------
def _deform_kernel(reg_ref, off_ref, o_ref, *, H, W, C):
    HW = H * W
    off = off_ref[0]                                   # (HW, 2*C): [dy0,dx0,dy1,dx1,..]
    pidx = jax.lax.broadcasted_iota(jnp.int32, (HW, 1), 0)
    py = (pidx // W).astype(jnp.float32)
    px = (pidx % W).astype(jnp.float32)
    qx = jax.lax.broadcasted_iota(jnp.int32, (HW, W), 1).astype(jnp.float32)
    qy = jax.lax.broadcasted_iota(jnp.int32, (HW, H), 1).astype(jnp.float32)

    outs = []
    for c in range(C):
        sy = py + off[:, 2 * c:2 * c + 1]              # (HW, 1)
        sx = px + off[:, 2 * c + 1:2 * c + 2]
        wx = jnp.maximum(1.0 - jnp.abs(sx - qx), 0.0)  # (HW, W) tent weights in x
        wy = jnp.maximum(1.0 - jnp.abs(sy - qy), 0.0)  # (HW, H) tent weights in y
        # reg_ref[0, c] is (W, H): t[p, qy] = sum_qx wx[p,qx] * reg[qy, qx]
        t = jnp.dot(wx, reg_ref[0, c], preferred_element_type=jnp.float32)
        outs.append(jnp.sum(wy * t, axis=1, keepdims=True))
    o_ref[0] = jnp.concatenate(outs, axis=1).astype(o_ref.dtype)


def deform_1x1_depthwise(reg_wh, off3, H, W):
    """reg_wh: (B, C, W, H) f32 (x-major so the kernel needs no transpose),
       off3: (B, HW, 2*C) f32.  Returns (B, HW, C)."""
    B, C, _, _ = reg_wh.shape
    HW = H * W
    kernel = functools.partial(_deform_kernel, H=H, W=W, C=C)
    return pl.pallas_call(
        kernel,
        out_shape=jax.ShapeDtypeStruct((B, HW, C), jnp.float32),
        grid_spec=pltpu.PrefetchScalarGridSpec(
            num_scalar_prefetch=0,
            grid=(B,),
            in_specs=[pl.BlockSpec((1, C, W, H), lambda b: (b, 0, 0, 0)),
                      pl.BlockSpec((1, HW, 2 * C), lambda b: (b, 0, 0))],
            out_specs=pl.BlockSpec((1, HW, C), lambda b: (b, 0, 0)),
        ),
        compiler_params=pltpu.CompilerParams(dimension_semantics=("parallel",)),
    )(reg_wh, off3)


# ----------------------------------------------------------------------------
# Deterministic parameter init (single FPN level; BN folded to eval affine)
# ----------------------------------------------------------------------------
def init_params(key, cin, c, num_classes):
    keys = iter(jax.random.split(key, 64))
    nxt = lambda: next(keys)
    ch = num_classes
    NP = max(128, ((ch + 127) // 128) * 128)   # lane-dense padded head width

    def conv1x1(k_in, k_out):
        return (jax.random.normal(nxt(), (k_in, k_out), jnp.float32)
                / jnp.sqrt(float(k_in)))

    def conv3x3(k_in, k_out):
        return (jax.random.normal(nxt(), (9, k_in, k_out), jnp.float32)
                / jnp.sqrt(9.0 * k_in))

    def bn():
        return (1.0 + 0.02 * jax.random.normal(nxt(), (c,), jnp.float32),
                0.02 * jax.random.normal(nxt(), (c,), jnp.float32))

    def sa_params():
        v = 0.05 * jax.random.normal(nxt(), (6,), jnp.float32)
        return {"cw": float(v[0]), "cb": 1.0 + float(v[1]),
                "sw": float(v[2]), "sb": 1.0 + float(v[3]),
                "gnw": 1.0 + float(v[4]), "gnb": float(v[5])}

    bf16 = lambda w: w.astype(jnp.bfloat16)

    # channel_shuffle(groups=2) folded into the first 3x3 conv of each branch:
    # conv(shuffle(x)) == conv'(x) with input-channel rows permuted by the
    # inverse shuffle permutation.
    idx = jnp.arange(c)
    inv_perm = jnp.where(idx < c // 2, 2 * idx, 2 * (idx - c // 2) + 1)
    fold_shuffle = lambda w9: w9[:, inv_perm, :]

    p = {"head_ones": jnp.ones((NP,), jnp.float32),
         "ones_c": jnp.ones((c,), jnp.float32)}

    implicitA = 0.02 * jax.random.normal(nxt(), (cin,), jnp.float32)
    p["implicitM"] = 1.0 + 0.02 * jax.random.normal(nxt(), (c,), jnp.float32)
    stem_w = conv1x1(cin, c)
    stem_scale, stem_shift = bn()
    p["stem_w"] = bf16(stem_w)
    p["stem_scale"] = stem_scale
    # (x + a) @ W == x @ W + a @ W  ->  exact fold of ImplicitA into the BN shift.
    p["stem_shift_eff"] = stem_shift + stem_scale * (implicitA @ stem_w)

    p["sa_cls"] = sa_params()
    p["sa_reg"] = sa_params()

    # offset branch
    p["regoff1_w"] = bf16(conv1x1(c, c))
    p["regoff1_scale"], p["regoff1_shift"] = bn()
    w = conv3x3(c, 8)
    b = 0.02 * jax.random.normal(nxt(), (8,), jnp.float32)
    p["regoff2_w"] = bf16(jnp.zeros((9, c, NP), jnp.float32).at[:, :, :8].set(w))
    p["regoff2_shift"] = jnp.zeros((NP,), jnp.float32).at[:8].set(b)

    def branch_convs():
        convs = []
        for j in range(2):
            w9 = conv3x3(c, c)
            if j == 0:
                w9 = fold_shuffle(w9)
            s, sh = bn()
            convs.append((bf16(w9), s, sh))
        return convs

    p["cls_convs"] = branch_convs()
    p["reg_convs"] = branch_convs()

    # lane-dense heads: pad cls head to NP; merge reg(4)+obj(1) into one matmul.
    wc = conv1x1(c, ch)
    bc = 0.02 * jax.random.normal(nxt(), (ch,), jnp.float32)
    p["cls_pred_w"] = bf16(jnp.zeros((c, NP), jnp.float32).at[:, :ch].set(wc))
    p["cls_pred_shift"] = jnp.zeros((NP,), jnp.float32).at[:ch].set(bc)

    wr = conv1x1(c, 4)
    br = 0.02 * jax.random.normal(nxt(), (4,), jnp.float32)
    wo = conv1x1(c, 1)
    bo = 0.02 * jax.random.normal(nxt(), (1,), jnp.float32)
    p["regobj_w"] = bf16(jnp.zeros((c, NP), jnp.float32)
                         .at[:, :4].set(wr).at[:, 4:5].set(wo))
    p["regobj_shift"] = (jnp.zeros((NP,), jnp.float32)
                         .at[:4].set(br).at[4:5].set(bo))
    return p


# ----------------------------------------------------------------------------
# DWHead forward (single FPN level)
# ----------------------------------------------------------------------------
def dw_head_forward(x_nchw, params, num_classes):
    B, Cin, H, W = x_nchw.shape
    HW = H * W
    C = params["stem_w"].shape[1]
    ch = num_classes

    # NCHW -> NHWC -> token-major (B*HW, Cin)
    x = jnp.transpose(x_nchw, (0, 2, 3, 1)).astype(jnp.float32).reshape(B * HW, Cin)

    # stem: (x + ImplicitA) -> Conv1x1 -> BN -> SiLU -> * ImplicitM (all fused)
    x2 = matmul_affine_act(x, params["stem_w"], params["stem_scale"],
                           params["stem_shift_eff"], params["implicitM"],
                           act="silu")
    x3 = x2.reshape(B, HW, C)

    # fused SALayer pair (x3 read once); outputs are pre-shuffle, the shuffle
    # is folded into cls_convs[0] / reg_convs[0] weights.
    cls_g, reg_g = sa_layer_pair(x3, params["sa_cls"], params["sa_reg"])

    # TODO(synk): cls_prob_conv1/2 ("M"), SKFF cls_attention and conv_centerness
    # never contribute to the reference forward output; the dead M branch is
    # dropped here per the performance review.

    # offset branch: 1x1 conv+BN+SiLU, then 3x3 conv (8 ch, lane-padded to 128)
    o1 = matmul_affine_act(x2, params["regoff1_w"], params["regoff1_scale"],
                           params["regoff1_shift"], params["ones_c"], act="silu")
    off = conv3x3_affine_act(o1.reshape(B, H, W, C), params["regoff2_w"],
                             params["head_ones"], params["regoff2_shift"],
                             act="none")[:, :, :8]

    # cls branch: 2 x (3x3 conv+BN+SiLU) then lane-dense 1x1 cls head
    cf = cls_g
    for w9, sc, sh in params["cls_convs"]:
        cf = conv3x3_affine_act(cf.reshape(B, H, W, C), w9, sc, sh, act="silu")
    cls_out = matmul_affine_act(cf.reshape(B * HW, C), params["cls_pred_w"],
                                params["head_ones"], params["cls_pred_shift"],
                                params["head_ones"], act="none")
    cls_out = cls_out.reshape(B, HW, -1)[:, :, :ch]

    # reg branch: 2 x (3x3 conv+BN+SiLU) then merged reg(4)+obj(1) head
    rf = reg_g
    for w9, sc, sh in params["reg_convs"]:
        rf = conv3x3_affine_act(rf.reshape(B, H, W, C), w9, sc, sh, act="silu")
    ro = matmul_affine_act(rf.reshape(B * HW, C), params["regobj_w"],
                           params["head_ones"], params["regobj_shift"],
                           params["head_ones"], act="none").reshape(B, HW, -1)
    reg_out = ro[:, :, :4]
    obj_out = ro[:, :, 4:5]

    # deform_conv2d(reg_out, off, ones(4,1,1,1)) == per-channel bilinear resample
    reg_wh = reg_out.reshape(B, H, W, 4).transpose(0, 3, 2, 1)   # (B, 4, W, H)
    reg_def = deform_1x1_depthwise(reg_wh, off, H, W)            # (B, HW, 4)

    out = jnp.concatenate([reg_def, obj_out, cls_out], axis=-1)  # (B, HW, 5+ch)
    return out.reshape(B, H, W, 4 + 1 + ch).transpose(0, 3, 1, 2)  # NCHW


if __name__ == "__main__":
    num_classes = 8
    in_channels = [128]        # SALayer(groups=64) requires channels >= 128
    B, H, W = 2, 8, 8

    key = jax.random.PRNGKey(0)
    kx, kp = jax.random.split(key)
    x = jax.random.normal(kx, (B, in_channels[0], H, W), jnp.float32)
    params = init_params(kp, in_channels[0], in_channels[0], num_classes)

    out = dw_head_forward(x, params, num_classes)
    out = jax.block_until_ready(out)

    assert out.shape == (B, 4 + 1 + num_classes, H, W), out.shape
    assert bool(jnp.all(jnp.isfinite(out)))
    print("KERNEL_OK")
</pallas_src>

<mosaic_0001>
module attributes {stable_mosaic.version = 11 : i64} {
  func.func @_mm_affine_act_kernel(%arg0: i32, %arg1: i32, %arg2: memref<128x128xf32, #tpu.memory_space<vmem>>, %arg3: memref<128x128xbf16, #tpu.memory_space<vmem>>, %arg4: memref<1x128xf32, #tpu.memory_space<vmem>>, %arg5: memref<1x128xf32, #tpu.memory_space<vmem>>, %arg6: memref<1x128xf32, #tpu.memory_space<vmem>>, %arg7: memref<128x128xf32, #tpu.memory_space<vmem>>) attributes {dimension_semantics = [#tpu.dimension_semantics<parallel>, #tpu.dimension_semantics<arbitrary>], iteration_bounds = array<i64: 1, 1>, scalar_prefetch = 0 : i64, scratch_operands = 0 : i64, tpu.core_type = #tpu.core_type<tc>, window_params = [{transform_indices = @transform_0, window_bounds = array<i64: 128, 128>}, {transform_indices = @transform_1, window_bounds = array<i64: 128, 128>}, {pipeline_mode = #tpu.pipeline_mode<synchronous>, transform_indices = @transform_2, window_bounds = array<i64: 1, 128>}, {pipeline_mode = #tpu.pipeline_mode<synchronous>, transform_indices = @transform_3, window_bounds = array<i64: 1, 128>}, {pipeline_mode = #tpu.pipeline_mode<synchronous>, transform_indices = @transform_4, window_bounds = array<i64: 1, 128>}, {transform_indices = @transform_5, window_bounds = array<i64: 128, 128>}]} {
    %c0_i32 = arith.constant 0 : i32
    %0 = arith.cmpi eq, %arg1, %c0_i32 : i32
    %1 = arith.extui %0 : i1 to i32
    %c0_i32_0 = arith.constant 0 : i32
    %2 = arith.cmpi ne, %1, %c0_i32_0 : i32
    scf.if %2 {
      %cst_10 = arith.constant 0.000000e+00 : f32
      %13 = vector.broadcast %cst_10 : f32 to vector<128x128xf32>
      %c0_11 = arith.constant 0 : index
      %c0_12 = arith.constant 0 : index
      %14 = vector.load %arg7[%c0_11, %c0_12] : memref<128x128xf32, #tpu.memory_space<vmem>>, vector<128x128xf32>
      tpu.vector_store %arg7[%c0_11, %c0_12], %13 {strides = array<i32>} : memref<128x128xf32, #tpu.memory_space<vmem>>, vector<128x128xf32>,
    } else {
    }
    %c0 = arith.constant 0 : index
    %c0_1 = arith.constant 0 : index
    %3 = vector.load %arg7[%c0, %c0_1] : memref<128x128xf32, #tpu.memory_space<vmem>>, vector<128x128xf32>
    %c0_2 = arith.constant 0 : index
    %c0_3 = arith.constant 0 : index
    %4 = vector.load %arg2[%c0_2, %c0_3] : memref<128x128xf32, #tpu.memory_space<vmem>>, vector<128x128xf32>
    %5 = arith.truncf %4 : vector<128x128xf32> to vector<128x128xbf16>
    %c0_4 = arith.constant 0 : index
    %c0_5 = arith.constant 0 : index
    %6 = vector.load %arg3[%c0_4, %c0_5] : memref<128x128xbf16, #tpu.memory_space<vmem>>, vector<128x128xbf16>
    %cst = arith.constant dense<0.000000e+00> : vector<128x128xf32>
    %7 = tpu.matmul %5, %6, %cst {dimension_numbers = #tpu.dot_dimension_numbers<[1], [0], [0], [1], [0, 0, 1, 1], [], []>} : vector<128x128xbf16>, vector<128x128xbf16>, vector<128x128xf32> -> vector<128x128xf32>
    %8 = arith.addf %3, %7 : vector<128x128xf32>
    %c0_6 = arith.constant 0 : index
    %c0_7 = arith.constant 0 : index
    %9 = vector.load %arg7[%c0_6, %c0_7] : memref<128x128xf32, #tpu.memory_space<vmem>>, vector<128x128xf32>
    tpu.vector_store %arg7[%c0_6, %c0_7], %8 {strides = array<i32>} : memref<128x128xf32, #tpu.memory_space<vmem>>, vector<128x128xf32>,
    %c0_i32_8 = arith.constant 0 : i32
    %10 = arith.cmpi eq, %arg1, %c0_i32_8 : i32
    %11 = arith.extui %10 : i1 to i32
    %c0_i32_9 = arith.constant 0 : i32
    %12 = arith.cmpi ne, %11, %c0_i32_9 : i32
    scf.if %12 {
      %c0_10 = arith.constant 0 : index
      %c0_11 = arith.constant 0 : index
      %13 = vector.load %arg7[%c0_10, %c0_11] : memref<128x128xf32, #tpu.memory_space<vmem>>, vector<128x128xf32>
      %c0_12 = arith.constant 0 : index
      %c0_13 = arith.constant 0 : index
      %14 = vector.load %arg4[%c0_12, %c0_13] : memref<1x128xf32, #tpu.memory_space<vmem>>, vector<1x128xf32>
      %15 = vector.broadcast %14 : vector<1x128xf32> to vector<128x128xf32>
      %16 = arith.mulf %13, %15 : vector<128x128xf32>
      %c0_14 = arith.constant 0 : index
      %c0_15 = arith.constant 0 : index
      %17 = vector.load %arg5[%c0_14, %c0_15] : memref<1x128xf32, #tpu.memory_space<vmem>>, vector<1x128xf32>
      %18 = vector.broadcast %17 : vector<1x128xf32> to vector<128x128xf32>
      %19 = arith.addf %16, %18 : vector<128x128xf32>
      %20 = arith.negf %19 : vector<128x128xf32>
      %21 = math.exp %20 : vector<128x128xf32>
      %cst_16 = arith.constant 1.000000e+00 : f32
      %22 = vector.broadcast %cst_16 : f32 to vector<128x128xf32>
      %23 = arith.addf %22, %21 : vector<128x128xf32>
      %24 = arith.divf %22, %23 : vector<128x128xf32>
      %25 = arith.mulf %19, %24 : vector<128x128xf32>
      %c0_17 = arith.constant 0 : index
      %c0_18 = arith.constant 0 : index
      %26 = vector.load %arg6[%c0_17, %c0_18] : memref<1x128xf32, #tpu.memory_space<vmem>>, vector<1x128xf32>
      %27 = vector.broadcast %26 : vector<1x128xf32> to vector<128x128xf32>
      %28 = arith.mulf %25, %27 : vector<128x128xf32>
      %c0_19 = arith.constant 0 : index
      %c0_20 = arith.constant 0 : index
      %29 = vector.load %arg7[%c0_19, %c0_20] : memref<128x128xf32, #tpu.memory_space<vmem>>, vector<128x128xf32>
      tpu.vector_store %arg7[%c0_19, %c0_20], %28 {strides = array<i32>} : memref<128x128xf32, #tpu.memory_space<vmem>>, vector<128x128xf32>,
    } else {
    }
    return
  }
  func.func @transform_0(%arg0: i32, %arg1: i32) -> (i32, i32) {
    %c0_i32 = arith.constant 0 : i32
    return %arg0, %arg1 : i32, i32
  }
  func.func @transform_1(%arg0: i32, %arg1: i32) -> (i32, i32) {
    %c0_i32 = arith.constant 0 : i32
    %c0_i32_0 = arith.constant 0 : i32
    return %arg1, %c0_i32 : i32, i32
  }
  func.func @transform_2(%arg0: i32, %arg1: i32) -> (i32, i32) {
    %c0_i32 = arith.constant 0 : i32
    %c0_i32_0 = arith.constant 0 : i32
    %c0_i32_1 = arith.constant 0 : i32
    return %c0_i32, %c0_i32_0 : i32, i32
  }
  func.func @transform_3(%arg0: i32, %arg1: i32) -> (i32, i32) {
    %c0_i32 = arith.constant 0 : i32
    %c0_i32_0 = arith.constant 0 : i32
    %c0_i32_1 = arith.constant 0 : i32
    return %c0_i32, %c0_i32_0 : i32, i32
  }
  func.func @transform_4(%arg0: i32, %arg1: i32) -> (i32, i32) {
    %c0_i32 = arith.constant 0 : i32
    %c0_i32_0 = arith.constant 0 : i32
    %c0_i32_1 = arith.constant 0 : i32
    return %c0_i32, %c0_i32_0 : i32, i32
  }
  func.func @transform_5(%arg0: i32, %arg1: i32) -> (i32, i32) {
    %c0_i32 = arith.constant 0 : i32
    %c0_i32_0 = arith.constant 0 : i32
    return %arg0, %c0_i32 : i32, i32
  }
}

</mosaic_0001>

<llo_original>
// kernel: tpu_custom_call.1
$region0: #{tpu_custom_call.1}
  #allocation0 [shape = 'u32[]', space=smem, size = 0x4, offset = 0x4, fixed_abs, tag = 'smem constant byte address 0x4 - core index']
  #allocation1 [shape = 'u32[144,128]{1,0:T(1,128)}', space=vmem, size = 0x12000, scoped, tag = 'internal scratch']
  %s0 = inlined_call_operand.hbm [shape: f32[128,128], index: 0, kind: input, shape index: {}]
  %s1 = inlined_call_operand.hbm [shape: bf16[128,128], index: 1, kind: input, shape index: {}]
  %s2 = inlined_call_operand.vmem [shape: f32[1,128], index: 2, kind: input, shape index: {}]
  %s3 = inlined_call_operand.vmem [shape: f32[1,128], index: 3, kind: input, shape index: {}]
  %s4 = inlined_call_operand.vmem [shape: f32[1,128], index: 4, kind: input, shape index: {}]
  %s5 = inlined_call_operand.hbm [shape: f32[128,128], index: 5, kind: output, shape index: {}]
  %s6 = sld [smem:[#allocation0]]
  $region46: #{tpu_custom_call.1} parent=0
    _
  %s8 = ssub.s32 1, %s6
  %s9 = scalar_select 0, %s8, %s6
  $region1: #{tpu_custom_call.1} parent=0
    #allocation2 [shape = 'u8[65536]{0}', space=vmem, size = 0x10000, scoped, tag = 'input window, operand 0, single buffered']
    #allocation3 [shape = 's32[1]{0}', space=sflag, size = 0x4, scoped, tag = 'scoped memory for tpu_custom_call.1']
    #allocation4 [shape = 's32[1]{0}', space=sflag, size = 0x4, scoped, tag = 'scoped memory for tpu_custom_call.1']
    #allocation5 [shape = 'u8[32768]{0}', space=vmem, size = 0x8000, scoped, tag = 'input window, operand 1, single buffered']
    #allocation6 [shape = 's32[1]{0}', space=sflag, size = 0x4, scoped, tag = 'scoped memory for tpu_custom_call.1']
    #allocation7 [shape = 'u8[65536]{0}', space=vmem, size = 0x10000, scoped, tag = 'output window, operand 0, single buffered']
    %10 = vsyncpa [#allocation3], 0
    %11 = vsyncpa [#allocation6], 0
    %12 = vsyncpa [#allocation4], 0
    // Predicated region
    $region2: #{tpu_custom_call.1} parent=1 // pred_check
      _
    $region3: #{tpu_custom_call.1} parent=1 // pred_check_branch
      %14 = sbr.rel (0) target = $region5
    $region4: #{tpu_custom_call.1} parent=1 // pred_region
      %s16 = ssub.s32 2048, 2048
      %17 = vsyncadd [#allocation3], %s16
      %s18 = sshll.u32 [#allocation2], 4
      %s19 = int_to_ptr.vmem [resolvable:$true] %s18
      %24 = dma.hbm_to_vmem [thread:$0]  %s0, 2048, %s19, [#allocation3], 128, 128, 8
    $region5: #{tpu_custom_call.1} parent=1 // pred_fallthru
      _
    // Predicated region
    $region6: #{tpu_custom_call.1} parent=1 // pred_check
      _
    $region7: #{tpu_custom_call.1} parent=1 // pred_check_branch
      %26 = sbr.rel (0) target = $region9
    $region8: #{tpu_custom_call.1} parent=1 // pred_region
      %s28 = ssub.s32 1024, 1024
      %29 = vsyncadd [#allocation6], %s28
      %s30 = sshll.u32 [#allocation5], 4
      %s31 = int_to_ptr.vmem [resolvable:$true] %s30
      %36 = dma.hbm_to_vmem [thread:$0]  %s1, 1024, %s31, [#allocation6], 64, 64, 4
    $region9: #{tpu_custom_call.1} parent=1 // pred_fallthru
      _
    // Predicated region
    $region10: #{tpu_custom_call.1} parent=1 // pred_check
      _
    $region11: #{tpu_custom_call.1} parent=1 // pred_check_branch
      %38 = sbr.rel (0) target = $region13
    $region12: #{tpu_custom_call.1} parent=1 // pred_region
      _
    $region13: #{tpu_custom_call.1} parent=1 // pred_fallthru
      _
    // Predicated region
    $region14: #{tpu_custom_call.1} parent=1 // pred_check
      _
    $region15: #{tpu_custom_call.1} parent=1 // pred_check_branch
      %40 = sbr.rel (0) target = $region17
    $region16: #{tpu_custom_call.1} parent=1 // pred_region
      _
    $region17: #{tpu_custom_call.1} parent=1 // pred_fallthru
      _
    // Predicated region
    $region18: #{tpu_custom_call.1} parent=1 // pred_check
      _
    $region19: #{tpu_custom_call.1} parent=1 // pred_check_branch
      %42 = sbr.rel (0) target = $region21
    $region20: #{tpu_custom_call.1} parent=1 // pred_region
      _
    $region21: #{tpu_custom_call.1} parent=1 // pred_fallthru
      _
    // Predicated region
    $region22: #{tpu_custom_call.1} parent=1 // pred_check
      _
    $region23: #{tpu_custom_call.1} parent=1 // pred_check_branch
      %44 = sbr.rel (0) target = $region25
    $region24: #{tpu_custom_call.1} parent=1 // pred_region
      %45 = dma.done [#allocation3], 2048
    $region25: #{tpu_custom_call.1} parent=1 // pred_fallthru
      _
    // Predicated region
    $region26: #{tpu_custom_call.1} parent=1 // pred_check
      _
    $region27: #{tpu_custom_call.1} parent=1 // pred_check_branch
      %47 = sbr.rel (0) target = $region29
    $region28: #{tpu_custom_call.1} parent=1 // pred_region
      %48 = dma.done [#allocation6], 1024
    $region29: #{tpu_custom_call.1} parent=1 // pred_fallthru
      _
    %p50 = scmp.eq.s32.totalorder 0, 0
    // Predicated region
    $region30: #{tpu_custom_call.1} parent=1 // pred_check
      %p51 = pneg %p50
    $region31: #{tpu_custom_call.1} parent=1 // pred_check_branch
      %53 = sbr.rel (%p51) target = $region33
    $region32: #{tpu_custom_call.1} parent=1 // pred_region
      %54 = vst [vmem:[#allocation7] sm:$0xff] 0.0
      %55 = vst [vmem:[#allocation7 + $0x8] sm:$0xff] 0.0
      %56 = vst [vmem:[#allocation7 + $0x10] sm:$0xff] 0.0
      %57 = vst [vmem:[#allocation7 + $0x18] sm:$0xff] 0.0
      %58 = vst [vmem:[#allocation7 + $0x20] sm:$0xff] 0.0
      %59 = vst [vmem:[#allocation7 + $0x28] sm:$0xff] 0.0
      %60 = vst [vmem:[#allocation7 + $0x30] sm:$0xff] 0.0
      %61 = vst [vmem:[#allocation7 + $0x38] sm:$0xff] 0.0
      %62 = vst [vmem:[#allocation7 + $0x40] sm:$0xff] 0.0
      %63 = vst [vmem:[#allocation7 + $0x48] sm:$0xff] 0.0
      %64 = vst [vmem:[#allocation7 + $0x50] sm:$0xff] 0.0
      %65 = vst [vmem:[#allocation7 + $0x58] sm:$0xff] 0.0
      %66 = vst [vmem:[#allocation7 + $0x60] sm:$0xff] 0.0
      %67 = vst [vmem:[#allocation7 + $0x68] sm:$0xff] 0.0
      %68 = vst [vmem:[#allocation7 + $0x70] sm:$0xff] 0.0
      %69 = vst [vmem:[#allocation7 + $0x78] sm:$0xff] 0.0
    $region33: #{tpu_custom_call.1} parent=1 // pred_fallthru
      _
    %v70 = vld [vmem:[#allocation7] sm:$0xff]
    %v71 = vld [vmem:[#allocation7 + $0x8] sm:$0xff]
    %v72 = vld [vmem:[#allocation7 + $0x10] sm:$0xff]
    %v73 = vld [vmem:[#allocation7 + $0x18] sm:$0xff]
    %v74 = vld [vmem:[#allocation7 + $0x20] sm:$0xff]
    %v75 = vld [vmem:[#allocation7 + $0x28] sm:$0xff]
    %v76 = vld [vmem:[#allocation7 + $0x30] sm:$0xff]
    %v77 = vld [vmem:[#allocation7 + $0x38] sm:$0xff]
    %v78 = vld [vmem:[#allocation7 + $0x40] sm:$0xff]
    %v79 = vld [vmem:[#allocation7 + $0x48] sm:$0xff]
    %v80 = vld [vmem:[#allocation7 + $0x50] sm:$0xff]
    %v81 = vld [vmem:[#allocation7 + $0x58] sm:$0xff]
    %v82 = vld [vmem:[#allocation7 + $0x60] sm:$0xff]
    %v83 = vld [vmem:[#allocation7 + $0x68] sm:$0xff]
    %v84 = vld [vmem:[#allocation7 + $0x70] sm:$0xff]
    %v85 = vld [vmem:[#allocation7 + $0x78] sm:$0xff]
    %v86 = vld [vmem:[#allocation2] sm:$0xff]
    %v87 = vld [vmem:[#allocation2 + $0x8] sm:$0xff]
    %v88 = vld [vmem:[#allocation2 + $0x10] sm:$0xff]
    %v89 = vld [vmem:[#allocation2 + $0x18] sm:$0xff]
    %v90 = vld [vmem:[#allocation2 + $0x20] sm:$0xff]
    %v91 = vld [vmem:[#allocation2 + $0x28] sm:$0xff]
    %v92 = vld [vmem:[#allocation2 + $0x30] sm:$0xff]
    %v93 = vld [vmem:[#allocation2 + $0x38] sm:$0xff]
    %v94 = vld [vmem:[#allocation2 + $0x40] sm:$0xff]
    %v95 = vld [vmem:[#allocation2 + $0x48] sm:$0xff]
    %v96 = vld [vmem:[#allocation2 + $0x50] sm:$0xff]
    %v97 = vld [vmem:[#allocation2 + $0x58] sm:$0xff]
    %v98 = vld [vmem:[#allocation2 + $0x60] sm:$0xff]
    %v99 = vld [vmem:[#allocation2 + $0x68] sm:$0xff]
    %v100 = vld [vmem:[#allocation2 + $0x70] sm:$0xff]
    %v101 = vld [vmem:[#allocation2 + $0x78] sm:$0xff]
    %v102 = vpack.c.bf16 %v87, %v86
    %v103 = vpack.c.bf16 %v89, %v88
    %v104 = vpack.c.bf16 %v91, %v90
    %v105 = vpack.c.bf16 %v93, %v92
    %v106 = vpack.c.bf16 %v95, %v94
    %v107 = vpack.c.bf16 %v97, %v96
    %v108 = vpack.c.bf16 %v99, %v98
    %v109 = vpack.c.bf16 %v101, %v100
    %v110 = vld [vmem:[#allocation5] sm:$0xf]
    %v111 = vld [vmem:[#allocation5 + $0x4] sm:$0xf]
    %v112 = vld [vmem:[#allocation5 + $0x8] sm:$0xf]
    %v113 = vld [vmem:[#allocation5 + $0xc] sm:$0xf]
    %v114 = vld [vmem:[#allocation5 + $0x10] sm:$0xf]
    %v115 = vld [vmem:[#allocation5 + $0x14] sm:$0xf]
    %v116 = vld [vmem:[#allocation5 + $0x18] sm:$0xf]
    %v117 = vld [vmem:[#allocation5 + $0x1c] sm:$0xf]
    %v118 = vld [vmem:[#allocation5 + $0x20] sm:$0xf]
    %v119 = vld [vmem:[#allocation5 + $0x24] sm:$0xf]
    %v120 = vld [vmem:[#allocation5 + $0x28] sm:$0xf]
    %v121 = vld [vmem:[#allocation5 + $0x2c] sm:$0xf]
    %v122 = vld [vmem:[#allocation5 + $0x30] sm:$0xf]
    %v123 = vld [vmem:[#allocation5 + $0x34] sm:$0xf]
    %v124 = vld [vmem:[#allocation5 + $0x38] sm:$0xf]
    %v125 = vld [vmem:[#allocation5 + $0x3c] sm:$0xf]
    %v142 = vunpack.c.l.b16 %v110
    %v143 = vunpack.c.l.b16 %v111
    %v144 = vunpack.c.l.b16 %v112
    %v145 = vunpack.c.l.b16 %v113
    %v146 = vunpack.c.l.b16 %v114
    %v147 = vunpack.c.l.b16 %v115
    %v148 = vunpack.c.l.b16 %v116
    %v149 = vunpack.c.l.b16 %v117
    %v150 = vunpack.c.l.b16 %v118
    %v151 = vunpack.c.l.b16 %v119
    %v152 = vunpack.c.l.b16 %v120
    %v153 = vunpack.c.l.b16 %v121
    %v154 = vunpack.c.l.b16 %v122
    %v155 = vunpack.c.l.b16 %v123
    %v156 = vunpack.c.l.b16 %v124
    %v157 = vunpack.c.l.b16 %v125
    %v158 = vpack.c.b16 %v143, %v142
    %v159 = vpack.c.b16 %v145, %v144
    %v160 = vpack.c.b16 %v147, %v146
    %v161 = vpack.c.b16 %v149, %v148
    %v162 = vpack.c.b16 %v151, %v150
    %v163 = vpack.c.b16 %v153, %v152
    %v164 = vpack.c.b16 %v155, %v154
    %v165 = vpack.c.b16 %v157, %v156
    %174 = vmatprep.subr.bf16.mxu0 0
    %175 = vmatpush1.bf16.msra.mxu0 %v165
    %176 = vmatprep.subr.bf16.mxu0 0
    %177 = vmatpush1.bf16.msra.mxu0 %v164
    %178 = vmatprep.subr.bf16.mxu0 0
    %179 = vmatpush1.bf16.msra.mxu0 %v163
    %180 = vmatprep.subr.bf16.mxu0 0
    %181 = vmatpush1.bf16.msra.mxu0 %v162
    %182 = vmatprep.subr.bf16.mxu0 0
    %183 = vmatpush1.bf16.msra.mxu0 %v161
    %184 = vmatprep.subr.bf16.mxu0 0
    %185 = vmatpush1.bf16.msra.mxu0 %v160
    %186 = vmatprep.subr.bf16.mxu0 0
    %187 = vmatpush1.bf16.msra.mxu0 %v159
    %188 = vmatprep.subr.bf16.mxu0 0
    %189 = vmatpush1.bf16.msra.mxu0 %v158
    %190 = vmatprep.subr.bf16.mxu0 0
    %191 = vmatpush2.bf16.msra.mxu0 0
    %192 = vmatprep.subr.bf16.mxu0 0
    %193 = vmatpush2.bf16.msra.mxu0 0
    %194 = vmatprep.subr.bf16.mxu0 0
    %195 = vmatpush2.bf16.msra.mxu0 0
    %196 = vmatprep.subr.bf16.mxu0 0
    %197 = vmatpush2.bf16.msra.mxu0 0
    %198 = vmatprep.subr.bf16.mxu0 0
    %199 = vmatpush2.bf16.msra.mxu0 0
    %200 = vmatprep.subr.bf16.mxu0 0
    %201 = vmatpush2.bf16.msra.mxu0 0
    %202 = vmatprep.subr.bf16.mxu0 0
    %203 = vmatpush2.bf16.msra.mxu0 0
    %204 = vmatprep.subr.bf16.mxu0 0
    %205 = vmatpush2.bf16.msra.mxu0 0
    %206 = vmatprep.mubr.bf16.mxu0 0
    %207 = vmatmul.mubr.bf16.gmra.mxu0 %v102
    %v208 = vpop.f32.mrf.mxu0
    %v209 = vadd.f32 0.0, %v208
    %v210 = vpop.f32.mrf.mxu0
    %v211 = vpop.f32.mrf.mxu0
    %v212 = vadd.f32 0.0, %v211
    %v213 = vpop.f32.mrf.mxu0
    %214 = vmatprep.mubr.bf16.mxu0 0
    %215 = vmatmul.mubr.bf16.gmra.mxu0 %v103
    %v216 = vpop.f32.mrf.mxu0
    %v217 = vadd.f32 0.0, %v216
    %v218 = vpop.f32.mrf.mxu0
    %v219 = vpop.f32.mrf.mxu0
    %v220 = vadd.f32 0.0, %v219
    %v221 = vpop.f32.mrf.mxu0
    %222 = vmatprep.mubr.bf16.mxu0 0
    %223 = vmatmul.mubr.bf16.gmra.mxu0 %v104
    %v224 = vpop.f32.mrf.mxu0
    %v225 = vadd.f32 0.0, %v224
    %v226 = vpop.f32.mrf.mxu0
    %v227 = vpop.f32.mrf.mxu0
    %v228 = vadd.f32 0.0, %v227
    %v229 = vpop.f32.mrf.mxu0
    %230 = vmatprep.mubr.bf16.mxu0 0
    %231 = vmatmul.mubr.bf16.gmra.mxu0 %v105
    %v232 = vpop.f32.mrf.mxu0
    %v233 = vadd.f32 0.0, %v232
    %v234 = vpop.f32.mrf.mxu0
    %v235 = vpop.f32.mrf.mxu0
    %v236 = vadd.f32 0.0, %v235
    %v237 = vpop.f32.mrf.mxu0
    %238 = vmatprep.mubr.bf16.mxu0 0
    %239 = vmatmul.mubr.bf16.gmra.mxu0 %v106
    %v240 = vpop.f32.mrf.mxu0
    %v241 = vadd.f32 0.0, %v240
    %v242 = vpop.f32.mrf.mxu0
    %v243 = vpop.f32.mrf.mxu0
    %v244 = vadd.f32 0.0, %v243
    %v245 = vpop.f32.mrf.mxu0
    %246 = vmatprep.mubr.bf16.mxu0 0
    %247 = vmatmul.mubr.bf16.gmra.mxu0 %v107
    %v248 = vpop.f32.mrf.mxu0
    %v249 = vadd.f32 0.0, %v248
    %v250 = vpop.f32.mrf.mxu0
    %v251 = vpop.f32.mrf.mxu0
    %v252 = vadd.f32 0.0, %v251
    %v253 = vpop.f32.mrf.mxu0
    %254 = vmatprep.mubr.bf16.mxu0 0
    %255 = vmatmul.mubr.bf16.gmra.mxu0 %v108
    %v256 = vpop.f32.mrf.mxu0
    %v257 = vadd.f32 0.0, %v256
    %v258 = vpop.f32.mrf.mxu0
    %v259 = vpop.f32.mrf.mxu0
    %v260 = vadd.f32 0.0, %v259
    %v261 = vpop.f32.mrf.mxu0
    %262 = vmatprep.mubr.bf16.mxu0 0
    %263 = vmatmul.mubr.bf16.gmra.mxu0 %v109
    %v264 = vpop.f32.mrf.mxu0
    %v265 = vadd.f32 0.0, %v264
    %v266 = vpop.f32.mrf.mxu0
    %v267 = vpop.f32.mrf.mxu0
    %v268 = vadd.f32 0.0, %v267
    %v269 = vpop.f32.mrf.mxu0
    %270 = vdwg.mxu0
    %v271 = vadd.f32 %v70, %v209
    %v272 = vadd.f32 %v71, %v212
    %v273 = vadd.f32 %v72, %v217
    %v274 = vadd.f32 %v73, %v220
    %v275 = vadd.f32 %v74, %v225
    %v276 = vadd.f32 %v75, %v228
    %v277 = vadd.f32 %v76, %v233
    %v278 = vadd.f32 %v77, %v236
    %v279 = vadd.f32 %v78, %v241
    %v280 = vadd.f32 %v79, %v244
    %v281 = vadd.f32 %v80, %v249
    %v282 = vadd.f32 %v81, %v252
    %v283 = vadd.f32 %v82, %v257
    %v284 = vadd.f32 %v83, %v260
    %v285 = vadd.f32 %v84, %v265
    %v286 = vadd.f32 %v85, %v268
    %287 = vst [vmem:[#allocation7] sm:$0xff] %v271
    %288 = vst [vmem:[#allocation7 + $0x8] sm:$0xff] %v272
    %289 = vst [vmem:[#allocation7 + $0x10] sm:$0xff] %v273
    %290 = vst [vmem:[#allocation7 + $0x18] sm:$0xff] %v274
    %291 = vst [vmem:[#allocation7 + $0x20] sm:$0xff] %v275
    %292 = vst [vmem:[#allocation7 + $0x28] sm:$0xff] %v276
    %293 = vst [vmem:[#allocation7 + $0x30] sm:$0xff] %v277
    %294 = vst [vmem:[#allocation7 + $0x38] sm:$0xff] %v278
    %295 = vst [vmem:[#allocation7 + $0x40] sm:$0xff] %v279
    %296 = vst [vmem:[#allocation7 + $0x48] sm:$0xff] %v280
    %297 = vst [vmem:[#allocation7 + $0x50] sm:$0xff] %v281
    %298 = vst [vmem:[#allocation7 + $0x58] sm:$0xff] %v282
    %299 = vst [vmem:[#allocation7 + $0x60] sm:$0xff] %v283
    %300 = vst [vmem:[#allocation7 + $0x68] sm:$0xff] %v284
    %301 = vst [vmem:[#allocation7 + $0x70] sm:$0xff] %v285
    %302 = vst [vmem:[#allocation7 + $0x78] sm:$0xff] %v286
    // Predicated region
    $region34: #{tpu_custom_call.1} parent=1 // pred_check
      %p303 = pneg %p50
    $region35: #{tpu_custom_call.1} parent=1 // pred_check_branch
      %305 = sbr.rel (%p303) target = $region37
    $region36: #{tpu_custom_call.1} parent=1 // pred_region
      %v306 = vld [vmem:[#allocation7] sm:$0xff]
      %v307 = vld [vmem:[#allocation7 + $0x8] sm:$0xff]
      %v308 = vld [vmem:[#allocation7 + $0x10] sm:$0xff]
      %v309 = vld [vmem:[#allocation7 + $0x18] sm:$0xff]
      %v310 = vld [vmem:[#allocation7 + $0x20] sm:$0xff]
      %v311 = vld [vmem:[#allocation7 + $0x28] sm:$0xff]
      %v312 = vld [vmem:[#allocation7 + $0x30] sm:$0xff]
      %v313 = vld [vmem:[#allocation7 + $0x38] sm:$0xff]
      %v314 = vld [vmem:[#allocation7 + $0x40] sm:$0xff]
      %v315 = vld [vmem:[#allocation7 + $0x48] sm:$0xff]
      %v316 = vld [vmem:[#allocation7 + $0x50] sm:$0xff]
      %v317 = vld [vmem:[#allocation7 + $0x58] sm:$0xff]
      %v318 = vld [vmem:[#allocation7 + $0x60] sm:$0xff]
      %v319 = vld [vmem:[#allocation7 + $0x68] sm:$0xff]
      %v320 = vld [vmem:[#allocation7 + $0x70] sm:$0xff]
      %v321 = vld [vmem:[#allocation7 + $0x78] sm:$0xff]
      %v322 = vld [vmem:[%s2] sm:$0x1]
      %v324 = vlaneseq
      %v325 = vshrl.u32 %v324, 7
      %v326 = vsub.s32 0, %v325
      %v327 = vrot.slane %v322, %v326
      %v329 = vmul.f32 %v306, %v327
      %v330 = vmul.f32 %v307, %v327
      %v331 = vmul.f32 %v308, %v327
      %v332 = vmul.f32 %v309, %v327
      %v333 = vmul.f32 %v310, %v327
      %v334 = vmul.f32 %v311, %v327
      %v335 = vmul.f32 %v312, %v327
      %v336 = vmul.f32 %v313, %v327
      %v337 = vmul.f32 %v314, %v327
      %v338 = vmul.f32 %v315, %v327
      %v339 = vmul.f32 %v316, %v327
      %v340 = vmul.f32 %v317, %v327
      %v341 = vmul.f32 %v318, %v327
      %v342 = vmul.f32 %v319, %v327
      %v343 = vmul.f32 %v320, %v327
      %v344 = vmul.f32 %v321, %v327
      %v345 = vld [vmem:[%s3] sm:$0x1]
      %v347 = vlaneseq
      %v348 = vshrl.u32 %v347, 7
      %v349 = vsub.s32 0, %v348
      %v350 = vrot.slane %v345, %v349
      %v352 = vadd.f32 %v329, %v350
      %v353 = vadd.f32 %v330, %v350
      %v354 = vadd.f32 %v331, %v350
      %v355 = vadd.f32 %v332, %v350
      %v356 = vadd.f32 %v333, %v350
      %v357 = vadd.f32 %v334, %v350
      %v358 = vadd.f32 %v335, %v350
      %v359 = vadd.f32 %v336, %v350
      %v360 = vadd.f32 %v337, %v350
      %v361 = vadd.f32 %v338, %v350
      %v362 = vadd.f32 %v339, %v350
      %v363 = vadd.f32 %v340, %v350
      %v364 = vadd.f32 %v341, %v350
      %v365 = vadd.f32 %v342, %v350
      %v366 = vadd.f32 %v343, %v350
      %v367 = vadd.f32 %v344, %v350
      %v368 = vxor.u32 %v352, 2147483648
      %v369 = vxor.u32 %v353, 2147483648
      %v370 = vxor.u32 %v354, 2147483648
      %v371 = vxor.u32 %v355, 2147483648
      %v372 = vxor.u32 %v356, 2147483648
      %v373 = vxor.u32 %v357, 2147483648
      %v374 = vxor.u32 %v358, 2147483648
      %v375 = vxor.u32 %v359, 2147483648
      %v376 = vxor.u32 %v360, 2147483648
      %v377 = vxor.u32 %v361, 2147483648
      %v378 = vxor.u32 %v362, 2147483648
      %v379 = vxor.u32 %v363, 2147483648
      %v380 = vxor.u32 %v364, 2147483648
      %v381 = vxor.u32 %v365, 2147483648
      %v382 = vxor.u32 %v366, 2147483648
      %v383 = vxor.u32 %v367, 2147483648
      %v384 = vmul.f32 %v368, 1.442695
      %v385 = vpow.pop %v384
      %v386 = vmul.f32 %v369, 1.442695
      %v387 = vpow.pop %v386
      %v388 = vmul.f32 %v370, 1.442695
      %v389 = vpow.pop %v388
      %v390 = vmul.f32 %v371, 1.442695
      %v391 = vpow.pop %v390
      %v392 = vmul.f32 %v372, 1.442695
      %v393 = vpow.pop %v392
      %v394 = vmul.f32 %v373, 1.442695
      %v395 = vpow.pop %v394
      %v396 = vmul.f32 %v374, 1.442695
      %v397 = vpow.pop %v396
      %v398 = vmul.f32 %v375, 1.442695
      %v399 = vpow.pop %v398
      %v400 = vmul.f32 %v376, 1.442695
      %v401 = vpow.pop %v400
      %v402 = vmul.f32 %v377, 1.442695
      %v403 = vpow.pop %v402
      %v404 = vmul.f32 %v378, 1.442695
      %v405 = vpow.pop %v404
      %v406 = vmul.f32 %v379, 1.442695
      %v407 = vpow.pop %v406
      %v408 = vmul.f32 %v380, 1.442695
      %v409 = vpow.pop %v408
      %v410 = vmul.f32 %v381, 1.442695
      %v411 = vpow.pop %v410
      %v412 = vmul.f32 %v382, 1.442695
      %v413 = vpow.pop %v412
      %v414 = vmul.f32 %v383, 1.442695
      %v415 = vpow.pop %v414
      %v416 = vadd.f32 %v385, 1.0
      %v417 = vadd.f32 %v387, 1.0
      %v418 = vadd.f32 %v389, 1.0
      %v419 = vadd.f32 %v391, 1.0
      %v420 = vadd.f32 %v393, 1.0
      %v421 = vadd.f32 %v395, 1.0
      %v422 = vadd.f32 %v397, 1.0
      %v423 = vadd.f32 %v399, 1.0
      %v424 = vadd.f32 %v401, 1.0
      %v425 = vadd.f32 %v403, 1.0
      %v426 = vadd.f32 %v405, 1.0
      %v427 = vadd.f32 %v407, 1.0
      %v428 = vadd.f32 %v409, 1.0
      %v429 = vadd.f32 %v411, 1.0
      %v430 = vadd.f32 %v413, 1.0
      %v431 = vadd.f32 %v415, 1.0
      %v432 = vrcp.pop %v416
      %v433 = vmul.f32 1.0, %v432
      %v434 = vrcp.pop %v417
      %v435 = vmul.f32 1.0, %v434
      %v436 = vrcp.pop %v418
      %v437 = vmul.f32 1.0, %v436
      %v438 = vrcp.pop %v419
      %v439 = vmul.f32 1.0, %v438
      %v440 = vrcp.pop %v420
      %v441 = vmul.f32 1.0, %v440
      %v442 = vrcp.pop %v421
      %v443 = vmul.f32 1.0, %v442
      %v444 = vrcp.pop %v422
      %v445 = vmul.f32 1.0, %v444
      %v446 = vrcp.pop %v423
      %v447 = vmul.f32 1.0, %v446
      %v448 = vrcp.pop %v424
      %v449 = vmul.f32 1.0, %v448
      %v450 = vrcp.pop %v425
      %v451 = vmul.f32 1.0, %v450
      %v452 = vrcp.pop %v426
      %v453 = vmul.f32 1.0, %v452
      %v454 = vrcp.pop %v427
      %v455 = vmul.f32 1.0, %v454
      %v456 = vrcp.pop %v428
      %v457 = vmul.f32 1.0, %v456
      %v458 = vrcp.pop %v429
      %v459 = vmul.f32 1.0, %v458
      %v460 = vrcp.pop %v430
      %v461 = vmul.f32 1.0, %v460
      %v462 = vrcp.pop %v431
      %v463 = vmul.f32 1.0, %v462
      %v464 = vmul.f32 %v352, %v433
      %v465 = vmul.f32 %v353, %v435
      %v466 = vmul.f32 %v354, %v437
      %v467 = vmul.f32 %v355, %v439
      %v468 = vmul.f32 %v356, %v441
      %v469 = vmul.f32 %v357, %v443
      %v470 = vmul.f32 %v358, %v445
      %v471 = vmul.f32 %v359, %v447
      %v472 = vmul.f32 %v360, %v449
      %v473 = vmul.f32 %v361, %v451
      %v474 = vmul.f32 %v362, %v453
      %v475 = vmul.f32 %v363, %v455
      %v476 = vmul.f32 %v364, %v457
      %v477 = vmul.f32 %v365, %v459
      %v478 = vmul.f32 %v366, %v461
      %v479 = vmul.f32 %v367, %v463
      %v480 = vld [vmem:[%s4] sm:$0x1]
      %v482 = vlaneseq
      %v483 = vshrl.u32 %v482, 7
      %v484 = vsub.s32 0, %v483
      %v485 = vrot.slane %v480, %v484
      %v487 = vmul.f32 %v464, %v485
      %v488 = vmul.f32 %v465, %v485
      %v489 = vmul.f32 %v466, %v485
      %v490 = vmul.f32 %v467, %v485
      %v491 = vmul.f32 %v468, %v485
      %v492 = vmul.f32 %v469, %v485
      %v493 = vmul.f32 %v470, %v485
      %v494 = vmul.f32 %v471, %v485
      %v495 = vmul.f32 %v472, %v485
      %v496 = vmul.f32 %v473, %v485
      %v497 = vmul.f32 %v474, %v485
      %v498 = vmul.f32 %v475, %v485
      %v499 = vmul.f32 %v476, %v485
      %v500 = vmul.f32 %v477, %v485
      %v501 = vmul.f32 %v478, %v485
      %v502 = vmul.f32 %v479, %v485
      %503 = vst [vmem:[#allocation7] sm:$0xff] %v487
      %504 = vst [vmem:[#allocation7 + $0x8] sm:$0xff] %v488
      %505 = vst [vmem:[#allocation7 + $0x10] sm:$0xff] %v489
      %506 = vst [vmem:[#allocation7 + $0x18] sm:$0xff] %v490
      %507 = vst [vmem:[#allocation7 + $0x20] sm:$0xff] %v491
      %508 = vst [vmem:[#allocation7 + $0x28] sm:$0xff] %v492
      %509 = vst [vmem:[#allocation7 + $0x30] sm:$0xff] %v493
      %510 = vst [vmem:[#allocation7 + $0x38] sm:$0xff] %v494
      %511 = vst [vmem:[#allocation7 + $0x40] sm:$0xff] %v495
      %512 = vst [vmem:[#allocation7 + $0x48] sm:$0xff] %v496
      %513 = vst [vmem:[#allocation7 + $0x50] sm:$0xff] %v497
      %514 = vst [vmem:[#allocation7 + $0x58] sm:$0xff] %v498
      %515 = vst [vmem:[#allocation7 + $0x60] sm:$0xff] %v499
      %516 = vst [vmem:[#allocation7 + $0x68] sm:$0xff] %v500
      %517 = vst [vmem:[#allocation7 + $0x70] sm:$0xff] %v501
      %518 = vst [vmem:[#allocation7 + $0x78] sm:$0xff] %v502
    $region37: #{tpu_custom_call.1} parent=1 // pred_fallthru
      _
    // Predicated region
    $region38: #{tpu_custom_call.1} parent=1 // pred_check
      _
    $region39: #{tpu_custom_call.1} parent=1 // pred_check_branch
      %520 = sbr.rel (0) target = $region41
    $region40: #{tpu_custom_call.1} parent=1 // pred_region
      %s522 = ssub.s32 2048, 2048
      %523 = vsyncadd [#allocation4], %s522
      %s524 = sshll.u32 [#allocation7], 4
      %s525 = int_to_ptr.vmem [resolvable:$true] %s524
      %530 = dma.vmem_to_hbm [thread:$0]  %s525, 2048, %s5, [#allocation4], 128, 128, 8
    $region41: #{tpu_custom_call.1} parent=1 // pred_fallthru
      _
    // Predicated region
    $region42: #{tpu_custom_call.1} parent=1 // pred_check
      _
    $region43: #{tpu_custom_call.1} parent=1 // pred_check_branch
      %532 = sbr.rel (0) target = $region45
    $region44: #{tpu_custom_call.1} parent=1 // pred_region
      %533 = dma.done [#allocation4], 2048
    $region45: #{tpu_custom_call.1} parent=1 // pred_fallthru
      _
    %534 = vsyncpa [#allocation3], 1
    %535 = vsyncpa [#allocation6], 1
    %536 = vsyncpa [#allocation4], 1

</llo_original>
